<compile_context>
chip_gen: v7x
topology: tpu7x:2x2x1
jax: 0.10.0
libtpu: 0.0.40
codegen_flags: <defaults>
</compile_context>

<pallas_src>
import functools

import jax
import jax.numpy as jnp
from jax import lax
from jax.experimental import pallas as pl
from jax.experimental.pallas import tpu as pltpu


# ---------------------------------------------------------------------------
# Kernel
# ---------------------------------------------------------------------------
def _loss_partials_kernel(pred_ref, true_ref, sumsq_out_ref, nan_out_ref,
                          sumsq_acc, nan_acc, *, chunk_rows, num_chunks):
    """One (split s, loss k, row-block r) grid step.

    pred_ref / true_ref : VMEM tiles (1, TR, 128) bf16/f32
    sumsq_out_ref       : VMEM tile  (1, 1, 8, 128) f32  -- resident across r axis
    nan_out_ref         : VMEM tile  (1, 1, 8, 128) i32  -- resident across r axis
    sumsq_acc           : VMEM scratch (8, 128) f32      -- partial sum of squared diffs
    nan_acc             : VMEM scratch (8, 128) i32      -- partial per-lane NaN counts
    """
    r = pl.program_id(2)

    @pl.when(r == 0)
    def _init():
        sumsq_acc[...] = jnp.zeros_like(sumsq_acc)
        nan_acc[...] = jnp.zeros_like(nan_acc)

    # Streamed reduction over 64-row (or smaller) chunks: keeps the live vreg set small
    # so the diff^2 intermediate never spills, and the bf16->f32 upcast hides under DMA.
    def body(i, carry):
        start = pl.multiple_of(i * chunk_rows, chunk_rows)
        p = pred_ref[0, pl.ds(start, chunk_rows), :].astype(jnp.float32)
        t = true_ref[0, pl.ds(start, chunk_rows), :].astype(jnp.float32)
        # (chunk, 128) -> (chunk//8, 8, 128); sum over the leading axis is pure VPU
        # (elementwise vreg adds), no cross-lane work in the hot loop.
        p = p.reshape(chunk_rows // 8, 8, 128)
        t = t.reshape(chunk_rows // 8, 8, 128)
        d = p - t
        sumsq_acc[...] += (d * d).sum(axis=0)
        nan_acc[...] += jnp.isnan(t).astype(jnp.int32).sum(axis=0)
        return carry

    lax.fori_loop(0, num_chunks, body, 0, unroll=True)

    @pl.when(r == pl.num_programs(2) - 1)
    def _store():
        sumsq_out_ref[...] = sumsq_acc[...].reshape(sumsq_out_ref.shape)
        nan_out_ref[...] = nan_acc[...].reshape(nan_out_ref.shape)


# ---------------------------------------------------------------------------
# Wrapper
# ---------------------------------------------------------------------------
def _round_up(x, m):
    return ((x + m - 1) // m) * m


def _plan_tiling(n_rows, num_splits, target_rows):
    """Row-tile (TR), #r-blocks per split, and padded row count (multiple of S*TR)."""
    assert target_rows % 16 == 0
    per_split = -(-n_rows // num_splits)          # ceil
    if per_split <= target_rows:
        # Tiny-slab fast path: a single r-step per (split, loss); no pipelining needed.
        tr = max(16, _round_up(per_split, 16))
        n_r_blocks = 1
    else:
        tr = target_rows
        n_r_blocks = -(-per_split // tr)
    return tr, n_r_blocks, num_splits * n_r_blocks * tr


def loss_handler_forward(preds_stacked, trues_stacked, weights,
                         *, num_row_splits=None, target_rows=1024):
    """Pallas-backed equivalent of LossHandler._single_forward.

    preds_stacked, trues_stacked: (K, R, 128) lane-dense slabs (bf16 recommended, f32 ok)
    weights:                      (K,) float32
    Returns: (total_loss scalar f32, components (K,) f32)
    """
    K, R, L = preds_stacked.shape
    assert L == 128, "slabs must be lane-dense (last dim 128)"
    assert trues_stacked.shape == preds_stacked.shape

    # v7x has 2 TensorCores; if K is too small for the K axis to occupy both, split the
    # row reduction across a leading parallel axis instead.  Harmless on v5e/v6e (1 TC).
    if num_row_splits is None:
        num_row_splits = 2 if (K < 2 and R >= 2 * target_rows) else 1
    S = max(1, int(num_row_splits))

    tr, n_r_blocks, r_pad = _plan_tiling(R, S, target_rows)

    if r_pad != R:
        # Zero padding: contributes 0 to sum-of-squares and is non-NaN, so the all-NaN
        # guard (which compares against the *original* per-sublane row counts) is safe.
        pad = r_pad - R
        preds_stacked = jnp.pad(preds_stacked, ((0, 0), (0, pad), (0, 0)))
        trues_stacked = jnp.pad(trues_stacked, ((0, 0), (0, pad), (0, 0)))

    chunk = next(c for c in (64, 32, 16) if tr % c == 0)
    kernel = functools.partial(_loss_partials_kernel,
                               chunk_rows=chunk, num_chunks=tr // chunk)

    sumsq_part, nan_part = pl.pallas_call(
        kernel,
        out_shape=(
            jax.ShapeDtypeStruct((S, K, 8, 128), jnp.float32),
            jax.ShapeDtypeStruct((S, K, 8, 128), jnp.int32),
        ),
        grid_spec=pltpu.PrefetchScalarGridSpec(
            num_scalar_prefetch=0,
            grid=(S, K, n_r_blocks),
            in_specs=[
                pl.BlockSpec((1, tr, L), lambda s, k, r: (k, s * n_r_blocks + r, 0)),
                pl.BlockSpec((1, tr, L), lambda s, k, r: (k, s * n_r_blocks + r, 0)),
            ],
            out_specs=[
                pl.BlockSpec((1, 1, 8, 128), lambda s, k, r: (s, k, 0, 0)),
                pl.BlockSpec((1, 1, 8, 128), lambda s, k, r: (s, k, 0, 0)),
            ],
            scratch_shapes=[
                pltpu.VMEM((8, 128), jnp.float32),  # sum-of-squares accumulator
                pltpu.VMEM((8, 128), jnp.int32),    # per-lane NaN-count accumulator
            ],
        ),
        compiler_params=pltpu.CompilerParams(
            dimension_semantics=("parallel", "parallel", "arbitrary"),
        ),
    )(preds_stacked, trues_stacked)

    # ----- tiny plain-JAX finalize (divide, all-NaN select, weighted total) -----
    n_elems = R * L
    sumsq = jnp.sum(sumsq_part, axis=(0, 2, 3))           # (K,) f32; NaNs propagate (like torch)
    nan_per_lane = jnp.sum(nan_part, axis=0)              # (K, 8, 128) exact small int counts

    # Expected per-sublane count of *real* (un-padded) rows: row g maps to sublane g % 8.
    base, rem = divmod(R, 8)
    expected = jnp.asarray([base + (1 if s < rem else 0) for s in range(8)],
                           dtype=jnp.int32)[None, :, None]          # (1, 8, 1)
    all_nan = jnp.all(nan_per_lane == expected, axis=(1, 2))        # (K,) exact, overflow-free

    mse = sumsq * (1.0 / n_elems)                          # mean over ORIGINAL element count
    components = jnp.where(all_nan, jnp.float32(0.0), mse)
    total = jnp.sum(weights.astype(jnp.float32) * components)
    return total, components


# ---------------------------------------------------------------------------
# Module "construction": deterministic synthetic loss_dict (MSELoss per entry).
# ---------------------------------------------------------------------------
def deep_access_nested_dict(d, keys):
    for k in keys:
        d = d[k]
    return d


LOSS_CONFIG = {
    "mse/domainA/rgb_recon": {"weight": 1.0,
                              "keys": {"pred": ["pred", "rgb"], "target": ["target", "rgb"]}},
    "mse/domainA/depth_recon": {"weight": 0.5,
                                "keys": {"pred": ["pred", "depth"], "target": ["target", "depth"]}},
}


def flatten_nchw_to_tiles(x):
    """(B,C,H,W) -> (R,128) lane-dense tile slab."""
    flat = x.reshape(-1)
    assert flat.shape[0] % 128 == 0
    return flat.reshape(-1, 128)


if __name__ == "__main__":
    key = jax.random.PRNGKey(0)
    B, C, H, W = 2, 4, 16, 16   # 2048 elements per loss -> (16, 128) tiles

    k1, k2, k3 = jax.random.split(key, 3)
    # Batch dict mirroring the nested-dict access of the PyTorch module.
    batch = {
        "pred": {
            "rgb": jax.random.normal(k1, (B, C, H, W), dtype=jnp.float32),
            "depth": jax.random.normal(k2, (B, C, H, W), dtype=jnp.float32),
        },
        "target": {
            "rgb": jax.random.normal(k3, (B, C, H, W), dtype=jnp.float32),
            # all-NaN target exercises the "All values are NaN" -> component = 0.0 branch
            "depth": jnp.full((B, C, H, W), jnp.nan, dtype=jnp.float32),
        },
    }

    loss_keys = list(LOSS_CONFIG.keys())
    preds, trues, weights = [], [], []
    for lk in loss_keys:
        cfg = LOSS_CONFIG[lk]
        preds.append(flatten_nchw_to_tiles(deep_access_nested_dict(batch, cfg["keys"]["pred"])))
        trues.append(flatten_nchw_to_tiles(deep_access_nested_dict(batch, cfg["keys"]["target"])))
        weights.append(cfg["weight"])

    # bf16 HBM slabs (kernel upcasts to f32): halves HBM bytes; this kernel is BW-bound.
    preds_stacked = jnp.stack(preds, axis=0).astype(jnp.bfloat16)   # (K, 16, 128)
    trues_stacked = jnp.stack(trues, axis=0).astype(jnp.bfloat16)   # (K, 16, 128)
    weights_arr = jnp.asarray(weights, dtype=jnp.float32)           # (K,)

    fwd = jax.jit(loss_handler_forward)
    total, components = fwd(preds_stacked, trues_stacked, weights_arr)
    jax.block_until_ready(total)

    # Also exercise the v7x-style row-split path (2 "cores"), which pads R and combines
    # per-split partials in the JAX glue.
    fwd_split = jax.jit(functools.partial(loss_handler_forward, num_row_splits=2))
    total_s, components_s = fwd_split(preds_stacked, trues_stacked, weights_arr)
    jax.block_until_ready(total_s)

    # Reference check in plain JAX (same semantics as the PyTorch module, on the bf16 slabs).
    ref_comps = []
    for i in range(len(loss_keys)):
        p = preds_stacked[i].astype(jnp.float32)
        t = trues_stacked[i].astype(jnp.float32)
        mse = jnp.mean((p - t) ** 2)
        ref_comps.append(jnp.where(jnp.all(jnp.isnan(t)), 0.0, mse))
    ref_comps = jnp.stack(ref_comps)
    ref_total = jnp.sum(weights_arr * ref_comps)

    assert jnp.allclose(components, ref_comps, atol=1e-5, rtol=1e-4), (components, ref_comps)
    assert jnp.allclose(total, ref_total, atol=1e-5, rtol=1e-4), (total, ref_total)
    assert jnp.allclose(components_s, ref_comps, atol=1e-5, rtol=1e-4), (components_s, ref_comps)
    assert jnp.allclose(total_s, ref_total, atol=1e-5, rtol=1e-4), (total_s, ref_total)

    # TODO(synk): use_combination=True path (pairwise loss combinations on summed pred/target
    # slabs with 0.5*(w1+w2) weights) is not wired into the driver; it would reuse this same
    # kernel on pre-summed slabs.
    print("KERNEL_OK")
</pallas_src>

<mosaic_0001>
module attributes {stable_mosaic.version = 11 : i64} {
  func.func @_loss_partials_kernel(%arg0: i32, %arg1: i32, %arg2: i32, %arg3: memref<1x16x128xbf16, #tpu.memory_space<vmem>>, %arg4: memref<1x16x128xbf16, #tpu.memory_space<vmem>>, %arg5: memref<1x1x8x128xf32, #tpu.memory_space<vmem>>, %arg6: memref<1x1x8x128xi32, #tpu.memory_space<vmem>>, %arg7: memref<8x128xf32, #tpu.memory_space<vmem>>, %arg8: memref<8x128xi32, #tpu.memory_space<vmem>>) attributes {dimension_semantics = [#tpu.dimension_semantics<parallel>, #tpu.dimension_semantics<parallel>, #tpu.dimension_semantics<arbitrary>], iteration_bounds = array<i64: 1, 2, 1>, scalar_prefetch = 0 : i64, scratch_operands = 2 : i64, tpu.core_type = #tpu.core_type<tc>, window_params = [{transform_indices = @transform_0, window_bounds = array<i64: 1, 16, 128>}, {transform_indices = @transform_1, window_bounds = array<i64: 1, 16, 128>}, {transform_indices = @transform_2, window_bounds = array<i64: 1, 1, 8, 128>}, {transform_indices = @transform_3, window_bounds = array<i64: 1, 1, 8, 128>}]} {
    %c0_i32 = arith.constant 0 : i32
    %0 = arith.cmpi eq, %arg2, %c0_i32 : i32
    %1 = arith.extui %0 : i1 to i32
    %c0_i32_0 = arith.constant 0 : i32
    %2 = arith.cmpi ne, %1, %c0_i32_0 : i32
    scf.if %2 {
      %cst_16 = arith.constant 0.000000e+00 : f32
      %30 = vector.broadcast %cst_16 : f32 to vector<8x128xf32>
      %c0_17 = arith.constant 0 : index
      %c0_18 = arith.constant 0 : index
      %31 = vector.load %arg7[%c0_17, %c0_18] : memref<8x128xf32, #tpu.memory_space<vmem>>, vector<8x128xf32>
      tpu.vector_store %arg7[%c0_17, %c0_18], %30 {strides = array<i32>} : memref<8x128xf32, #tpu.memory_space<vmem>>, vector<8x128xf32>,
      %c0_i32_19 = arith.constant 0 : i32
      %32 = vector.broadcast %c0_i32_19 : i32 to vector<8x128xi32>
      %c0_20 = arith.constant 0 : index
      %c0_21 = arith.constant 0 : index
      %33 = vector.load %arg8[%c0_20, %c0_21] : memref<8x128xi32, #tpu.memory_space<vmem>>, vector<8x128xi32>
      tpu.vector_store %arg8[%c0_20, %c0_21], %32 {strides = array<i32>} : memref<8x128xi32, #tpu.memory_space<vmem>>, vector<8x128xi32>,
    } else {
    }
    %c0_i32_1 = arith.constant 0 : i32
    %c16_i32 = arith.constant 16 : i32
    %3 = arith.muli %c0_i32_1, %c16_i32 : i32
    %4 = tpu.assume_multiple %3, 16 : i32
    %c0 = arith.constant 0 : index
    %5 = arith.index_cast %4 : i32 to index
    %c0_2 = arith.constant 0 : index
    %6 = vector.load %arg3[%c0, %5, %c0_2] : memref<1x16x128xbf16, #tpu.memory_space<vmem>>, vector<1x16x128xbf16>
    %7 = vector.shape_cast %6 : vector<1x16x128xbf16> to vector<16x128xbf16>
    %8 = arith.extf %7 : vector<16x128xbf16> to vector<16x128xf32>
    %c0_3 = arith.constant 0 : index
    %9 = arith.index_cast %4 : i32 to index
    %c0_4 = arith.constant 0 : index
    %10 = vector.load %arg4[%c0_3, %9, %c0_4] : memref<1x16x128xbf16, #tpu.memory_space<vmem>>, vector<1x16x128xbf16>
    %11 = vector.shape_cast %10 : vector<1x16x128xbf16> to vector<16x128xbf16>
    %12 = arith.extf %11 : vector<16x128xbf16> to vector<16x128xf32>
    %13 = vector.shape_cast %8 : vector<16x128xf32> to vector<2x8x128xf32>
    %14 = vector.shape_cast %12 : vector<16x128xf32> to vector<2x8x128xf32>
    %15 = arith.subf %13, %14 : vector<2x8x128xf32>
    %c0_5 = arith.constant 0 : index
    %c0_6 = arith.constant 0 : index
    %16 = vector.load %arg7[%c0_5, %c0_6] : memref<8x128xf32, #tpu.memory_space<vmem>>, vector<8x128xf32>
    %17 = arith.mulf %15, %15 : vector<2x8x128xf32>
    %cst = arith.constant dense<0.000000e+00> : vector<8x128xf32>
    %18 = vector.multi_reduction <add>, %17, %cst [0] : vector<2x8x128xf32> to vector<8x128xf32>
    %19 = arith.addf %16, %18 : vector<8x128xf32>
    %c0_7 = arith.constant 0 : index
    %c0_8 = arith.constant 0 : index
    %20 = vector.load %arg7[%c0_7, %c0_8] : memref<8x128xf32, #tpu.memory_space<vmem>>, vector<8x128xf32>
    tpu.vector_store %arg7[%c0_7, %c0_8], %19 {strides = array<i32>} : memref<8x128xf32, #tpu.memory_space<vmem>>, vector<8x128xf32>,
    %c0_9 = arith.constant 0 : index
    %c0_10 = arith.constant 0 : index
    %21 = vector.load %arg8[%c0_9, %c0_10] : memref<8x128xi32, #tpu.memory_space<vmem>>, vector<8x128xi32>
    %22 = arith.cmpf one, %14, %14 : vector<2x8x128xf32>
    %23 = arith.extui %22 : vector<2x8x128xi1> to vector<2x8x128xi32>
    %cst_11 = arith.constant dense<0> : vector<8x128xi32>
    %24 = vector.multi_reduction <add>, %23, %cst_11 [0] : vector<2x8x128xi32> to vector<8x128xi32>
    %25 = arith.addi %21, %24 : vector<8x128xi32>
    %c0_12 = arith.constant 0 : index
    %c0_13 = arith.constant 0 : index
    %26 = vector.load %arg8[%c0_12, %c0_13] : memref<8x128xi32, #tpu.memory_space<vmem>>, vector<8x128xi32>
    tpu.vector_store %arg8[%c0_12, %c0_13], %25 {strides = array<i32>} : memref<8x128xi32, #tpu.memory_space<vmem>>, vector<8x128xi32>,
    %c1_i32 = arith.constant 1 : i32
    %c0_i32_14 = arith.constant 0 : i32
    %27 = arith.cmpi eq, %arg2, %c0_i32_14 : i32
    %28 = arith.extui %27 : i1 to i32
    %c0_i32_15 = arith.constant 0 : i32
    %29 = arith.cmpi ne, %28, %c0_i32_15 : i32
    scf.if %29 {
      %c0_16 = arith.constant 0 : index
      %c0_17 = arith.constant 0 : index
      %30 = vector.load %arg7[%c0_16, %c0_17] : memref<8x128xf32, #tpu.memory_space<vmem>>, vector<8x128xf32>
      %31 = vector.shape_cast %30 : vector<8x128xf32> to vector<1x1x8x128xf32>
      %c0_18 = arith.constant 0 : index
      %c0_19 = arith.constant 0 : index
      %c0_20 = arith.constant 0 : index
      %c0_21 = arith.constant 0 : index
      %32 = vector.load %arg5[%c0_18, %c0_19, %c0_20, %c0_21] : memref<1x1x8x128xf32, #tpu.memory_space<vmem>>, vector<1x1x8x128xf32>
      tpu.vector_store %arg5[%c0_18, %c0_19, %c0_20, %c0_21], %31 {strides = array<i32>} : memref<1x1x8x128xf32, #tpu.memory_space<vmem>>, vector<1x1x8x128xf32>,
      %c0_22 = arith.constant 0 : index
      %c0_23 = arith.constant 0 : index
      %33 = vector.load %arg8[%c0_22, %c0_23] : memref<8x128xi32, #tpu.memory_space<vmem>>, vector<8x128xi32>
      %34 = vector.shape_cast %33 : vector<8x128xi32> to vector<1x1x8x128xi32>
      %c0_24 = arith.constant 0 : index
      %c0_25 = arith.constant 0 : index
      %c0_26 = arith.constant 0 : index
      %c0_27 = arith.constant 0 : index
      %35 = vector.load %arg6[%c0_24, %c0_25, %c0_26, %c0_27] : memref<1x1x8x128xi32, #tpu.memory_space<vmem>>, vector<1x1x8x128xi32>
      tpu.vector_store %arg6[%c0_24, %c0_25, %c0_26, %c0_27], %34 {strides = array<i32>} : memref<1x1x8x128xi32, #tpu.memory_space<vmem>>, vector<1x1x8x128xi32>,
    } else {
    }
    return
  }
  func.func @transform_0(%arg0: i32, %arg1: i32, %arg2: i32) -> (i32, i32, i32) {
    %c1_i32 = arith.constant 1 : i32
    %0 = arith.muli %arg0, %c1_i32 : i32
    %1 = arith.addi %0, %arg2 : i32
    %c0_i32 = arith.constant 0 : i32
    %c0_i32_0 = arith.constant 0 : i32
    return %arg1, %1, %c0_i32 : i32, i32, i32
  }
  func.func @transform_1(%arg0: i32, %arg1: i32, %arg2: i32) -> (i32, i32, i32) {
    %c1_i32 = arith.constant 1 : i32
    %0 = arith.muli %arg0, %c1_i32 : i32
    %1 = arith.addi %0, %arg2 : i32
    %c0_i32 = arith.constant 0 : i32
    %c0_i32_0 = arith.constant 0 : i32
    return %arg1, %1, %c0_i32 : i32, i32, i32
  }
  func.func @transform_2(%arg0: i32, %arg1: i32, %arg2: i32) -> (i32, i32, i32, i32) {
    %c0_i32 = arith.constant 0 : i32
    %c0_i32_0 = arith.constant 0 : i32
    %c0_i32_1 = arith.constant 0 : i32
    return %arg0, %arg1, %c0_i32, %c0_i32_0 : i32, i32, i32, i32
  }
  func.func @transform_3(%arg0: i32, %arg1: i32, %arg2: i32) -> (i32, i32, i32, i32) {
    %c0_i32 = arith.constant 0 : i32
    %c0_i32_0 = arith.constant 0 : i32
    %c0_i32_1 = arith.constant 0 : i32
    return %arg0, %arg1, %c0_i32, %c0_i32_0 : i32, i32, i32, i32
  }
}

</mosaic_0001>

<llo_original>
// kernel: loss_handler_forward.1
$region0: #{loss_handler_forward.1}
  #allocation0 [shape = 'u32[]', space=smem, size = 0x4, offset = 0x4, fixed_abs, tag = 'smem constant byte address 0x4 - core index']
  #allocation1 [shape = 'u32[144,128]{1,0:T(1,128)}', space=vmem, size = 0x12000, scoped, tag = 'internal scratch']
  #allocation2 [shape = 'f32[8,128]{1,0:T(8,128)}', space=vmem, size = 0x1000, scoped, tag = 'scratch operand']
  #allocation3 [shape = 's32[8,128]{1,0:T(8,128)}', space=vmem, size = 0x1000, scoped, tag = 'scratch operand']
  %s0 = inlined_call_operand.hbm [shape: bf16[2,16,128], index: 0, kind: input, shape index: {}]
  %s1 = inlined_call_operand.hbm [shape: bf16[2,16,128], index: 1, kind: input, shape index: {}]
  %s2 = inlined_call_operand.vmem [shape: f32[1,2,8,128], index: 2, kind: output, shape index: {0}]
  %s3 = inlined_call_operand.vmem [shape: s32[1,2,8,128], index: 3, kind: output, shape index: {1}]
  %4 = xla_tuple %s2, %s3
  %s5 = sld [smem:[#allocation0]]
  $region65: #{loss_handler_forward.1} parent=0
    _
  %s7 = ssub.s32 1, %s5
  %s8 = scalar_select 0, %s7, %s5
  $region1: #{loss_handler_forward.1} parent=0
    #allocation4 [shape = 'u8[8192]{0}', space=vmem, size = 0x2000, scoped, tag = 'input window, operand 0']
    #allocation5 [shape = 's32[2]{0}', space=sflag, size = 0x8, scoped, tag = 'scoped memory for loss_handler_forward.1']
    #allocation6 [shape = 'u8[8192]{0}', space=vmem, size = 0x2000, scoped, tag = 'input window, operand 1']
    #allocation7 [shape = 's32[2]{0}', space=sflag, size = 0x8, scoped, tag = 'scoped memory for loss_handler_forward.1']
    %9 = vsyncpa [#allocation5], 0
    %s10 = scalar_lea.sflag [#allocation5], 1
    %11 = vsyncpa %s10, 0
    %12 = vsyncpa [#allocation7], 0
    %s13 = scalar_lea.sflag [#allocation7], 1
    %14 = vsyncpa %s13, 0
    loop: start=0, step=1, limit=4
    $region2: #{loss_handler_forward.1} parent=1 // loop_pre_header
      _
    $region3: #{loss_handler_forward.1} parent=1 // loop_header
      %s16 = sphi 0, %s20
      %p17 = scmp.ge.s32.totalorder %s16, 4
      %s23 = sphi 0, %s42
      %s24 = sphi 0, %s38
      %s25 = sphi 0, %s34
      %s26 = sphi 0, %s23
      %s27 = sphi 0, %s24
      %s28 = sphi 0, %s25
      %s29 = sphi 0, %s26
      %s30 = sphi 0, %s27
      %s31 = sphi 0, %s28
      %s49 = sphi 0, %s51
      %s52 = sphi 0, %s49
      %s53 = sphi 0, %s52
      %s69 = sphi 0, %s53
      %s79 = sphi 0, %s81
      %s82 = sphi 0, %s79
      %s83 = sphi 0, %s82
      %s99 = sphi 0, %s83
      %s107 = sphi 0, %s109
      %s110 = sphi 0, %s107
      %s111 = sphi 0, %s110
      %s127 = sphi 0, %s111
      %s135 = sphi 0, %s137
      %s138 = sphi 0, %s135
      %s139 = sphi 0, %s138
      %s155 = sphi 0, %s139
    $region4: #{loss_handler_forward.1} parent=1 // loop_header_branch
      %19 = sbr.rel (%p17) target = $region8
    $region5: #{loss_handler_forward.1} parent=1 // loop_body
      %s21 = ssub.s32 %s16, 1
      %s22 = ssub.s32 %s16, 2
      %s32 = sadd.s32 1, %s25
      %p33 = scmp.ge.s32.totalorder %s32, 1
      %s34 = scalar_select %p33, 0, %s32
      %s35 = sadd.s32 1, %s24
      %s36 = scalar_select %p33, %s35, %s24
      %p37 = scmp.ge.s32.totalorder %s36, 2
      %s38 = scalar_select %p37, 0, %s36
      %s39 = sadd.s32 1, %s23
      %s40 = scalar_select %p37, %s39, %s23
      %p41 = scmp.ge.s32.totalorder %s40, 1
      %s42 = scalar_select %p41, 0, %s40
      %s43 = sadd.s32 %s23, %s25
      %s44 = sadd.s32 %s42, %s34
      %s45 = ssub.s32 %s24, %s38
      %s46 = ssub.s32 %s43, %s44
      %s47 = sor.u32 %s45, %s46
      %p48 = scmp.eq.s32.totalorder %s47, 0
      %s50 = sadd.s32 %s49, 1
      %s51 = scalar_select %p48, %s49, %s50
      %p54 = pneg %p48
      %p55 = scmp.eq.s32.totalorder %s16, 1
      %p56 = por %p54, %p55
      %p57 = scmp.ne.s32.totalorder %s49, %s52
      %p58 = scmp.eq.s32.totalorder %s16, 0
      %p59 = por %p57, %p58
      %p60 = scmp.ne.s32.totalorder %s49, %s52
      %p61 = scmp.eq.s32.totalorder %s21, 1
      %p62 = por %p60, %p61
      %p63 = scmp.ne.s32.totalorder %s52, %s53
      %p64 = scmp.eq.s32.totalorder %s21, 0
      %p65 = por %p63, %p64
      %p66 = scmp.ne.s32.totalorder %s52, %s53
      %p67 = scmp.eq.s32.totalorder %s22, 1
      %p68 = por %p66, %p67
      %p70 = scmp.ne.s32.totalorder %s53, %s69
      %p71 = scmp.eq.s32.totalorder %s22, 0
      %p72 = por %p70, %p71
      %s73 = sadd.s32 %s23, %s25
      %s74 = sadd.s32 %s42, %s34
      %s75 = ssub.s32 %s24, %s38
      %s76 = ssub.s32 %s73, %s74
      %s77 = sor.u32 %s75, %s76
      %p78 = scmp.eq.s32.totalorder %s77, 0
      %s80 = sadd.s32 %s79, 1
      %s81 = scalar_select %p78, %s79, %s80
      %p84 = pneg %p78
      %p85 = scmp.eq.s32.totalorder %s16, 1
      %p86 = por %p84, %p85
      %p87 = scmp.ne.s32.totalorder %s79, %s82
      %p88 = scmp.eq.s32.totalorder %s16, 0
      %p89 = por %p87, %p88
      %p90 = scmp.ne.s32.totalorder %s79, %s82
      %p91 = scmp.eq.s32.totalorder %s21, 1
      %p92 = por %p90, %p91
      %p93 = scmp.ne.s32.totalorder %s82, %s83
      %p94 = scmp.eq.s32.totalorder %s21, 0
      %p95 = por %p93, %p94
      %p96 = scmp.ne.s32.totalorder %s82, %s83
      %p97 = scmp.eq.s32.totalorder %s22, 1
      %p98 = por %p96, %p97
      %p100 = scmp.ne.s32.totalorder %s83, %s99
      %p101 = scmp.eq.s32.totalorder %s22, 0
      %p102 = por %p100, %p101
      %s103 = ssub.s32 %s23, %s42
      %s104 = ssub.s32 %s24, %s38
      %s105 = sor.u32 %s103, %s104
      %p106 = scmp.eq.s32.totalorder %s105, 0
      %s108 = sadd.s32 %s107, 1
      %s109 = scalar_select %p106, %s107, %s108
      %p112 = pneg %p106
      %p113 = scmp.eq.s32.totalorder %s16, 1
      %p114 = por %p112, %p113
      %p115 = scmp.ne.s32.totalorder %s107, %s110
      %p116 = scmp.eq.s32.totalorder %s16, 0
      %p117 = por %p115, %p116
      %p118 = scmp.ne.s32.totalorder %s107, %s110
      %p119 = scmp.eq.s32.totalorder %s21, 1
      %p120 = por %p118, %p119
      %p121 = scmp.ne.s32.totalorder %s110, %s111
      %p122 = scmp.eq.s32.totalorder %s21, 0
      %p123 = por %p121, %p122
      %p124 = scmp.ne.s32.totalorder %s110, %s111
      %p125 = scmp.eq.s32.totalorder %s22, 1
      %p126 = por %p124, %p125
      %p128 = scmp.ne.s32.totalorder %s111, %s127
      %p129 = scmp.eq.s32.totalorder %s22, 0
      %p130 = por %p128, %p129
      %s131 = ssub.s32 %s23, %s42
      %s132 = ssub.s32 %s24, %s38
      %s133 = sor.u32 %s131, %s132
      %p134 = scmp.eq.s32.totalorder %s133, 0
      %s136 = sadd.s32 %s135, 1
      %s137 = scalar_select %p134, %s135, %s136
      %p140 = pneg %p134
      %p141 = scmp.eq.s32.totalorder %s16, 1
      %p142 = por %p140, %p141
      %p143 = scmp.ne.s32.totalorder %s135, %s138
      %p144 = scmp.eq.s32.totalorder %s16, 0
      %p145 = por %p143, %p144
      %p146 = scmp.ne.s32.totalorder %s135, %s138
      %p147 = scmp.eq.s32.totalorder %s21, 1
      %p148 = por %p146, %p147
      %p149 = scmp.ne.s32.totalorder %s138, %s139
      %p150 = scmp.eq.s32.totalorder %s21, 0
      %p151 = por %p149, %p150
      %p152 = scmp.ne.s32.totalorder %s138, %s139
      %p153 = scmp.eq.s32.totalorder %s22, 1
      %p154 = por %p152, %p153
      %p156 = scmp.ne.s32.totalorder %s139, %s155
      %p157 = scmp.eq.s32.totalorder %s22, 0
      %p158 = por %p156, %p157
      %p159 = scmp.le.s32.totalorder 1, %s16
      %p160 = scmp.lt.s32.totalorder %s16, 3
      %p161 = pnand %p159, %p160
      %p162 = pneg %p161
      // Predicated region
      $region9: #{loss_handler_forward.1} parent=5 // pred_check
        _
      $region10: #{loss_handler_forward.1} parent=5 // pred_check_branch
        %164 = sbr.rel (%p161) target = $region12
      $region11: #{loss_handler_forward.1} parent=5 // pred_region
        %s165 = ssub.s32 %s16, 1
      $region12: #{loss_handler_forward.1} parent=5 // pred_fallthru
        _
      %p166 = scmp.lt.s32.totalorder %s16, 2
      // Predicated region
      $region13: #{loss_handler_forward.1} parent=5 // pred_check
        %p167 = pneg %p166
      $region14: #{loss_handler_forward.1} parent=5 // pred_check_branch
        %169 = sbr.rel (%p167) target = $region16
      $region15: #{loss_handler_forward.1} parent=5 // pred_region
        // Predicated region
        $region17: #{loss_handler_forward.1} parent=15 // pred_check
          %p170 = pneg %p59
        $region18: #{loss_handler_forward.1} parent=15 // pred_check_branch
          %172 = sbr.rel (%p170) target = $region20
        $region19: #{loss_handler_forward.1} parent=15 // pred_region
          %s173 = sand.u32 %s49, 1
          %s174 = scalar_lea.sflag [#allocation5], %s173
          %s175 = sand.u32 %s49, 1
          %s176 = smul.addr %s175, 8
          %s177 = scalar_lea.vmem [#allocation4], %s176
          %s178 = sadd.s32 %s23, %s25
          %s179 = smul.u32 2, %s178
          %s181 = ssub.s32 128, 128
          %182 = vsyncadd %s174, %s181
          %s183 = smul.addr %s24, 2
          %s184 = sadd.s32 %s179, %s183
          %s185 = smul.addr %s184, 64
          %s186 = scalar_lea.hbm %s0, %s185
          %s187 = sshll.u32 %s177, 4
          %s188 = int_to_ptr.vmem [resolvable:$true] %s187
          %193 = dma.hbm_to_vmem [thread:$0]  %s186, 128, %s188, %s174, 64, 64, 4
        $region20: #{loss_handler_forward.1} parent=15 // pred_fallthru
          _
        // Predicated region
        $region21: #{loss_handler_forward.1} parent=15 // pred_check
          %p194 = pneg %p89
        $region22: #{loss_handler_forward.1} parent=15 // pred_check_branch
          %196 = sbr.rel (%p194) target = $region24
        $region23: #{loss_handler_forward.1} parent=15 // pred_region
          %s197 = sand.u32 %s79, 1
          %s198 = scalar_lea.sflag [#allocation7], %s197
          %s199 = sand.u32 %s79, 1
          %s200 = smul.addr %s199, 8
          %s201 = scalar_lea.vmem [#allocation6], %s200
          %s202 = sadd.s32 %s23, %s25
          %s203 = smul.u32 2, %s202
          %s205 = ssub.s32 128, 128
          %206 = vsyncadd %s198, %s205
          %s207 = smul.addr %s24, 2
          %s208 = sadd.s32 %s203, %s207
          %s209 = smul.addr %s208, 64
          %s210 = scalar_lea.hbm %s1, %s209
          %s211 = sshll.u32 %s201, 4
          %s212 = int_to_ptr.vmem [resolvable:$true] %s211
          %217 = dma.hbm_to_vmem [thread:$0]  %s210, 128, %s212, %s198, 64, 64, 4
        $region24: #{loss_handler_forward.1} parent=15 // pred_fallthru
          _
      $region16: #{loss_handler_forward.1} parent=5 // pred_fallthru
        _
      %p218 = scmp.le.s32.totalorder 1, %s16
      %p219 = scmp.lt.s32.totalorder %s16, 3
      %p220 = pnand %p218, %p219
      %p221 = pneg %p220
      // Predicated region
      $region25: #{loss_handler_forward.1} parent=5 // pred_check
        _
      $region26: #{loss_handler_forward.1} parent=5 // pred_check_branch
        %223 = sbr.rel (%p220) target = $region28
      $region27: #{loss_handler_forward.1} parent=5 // pred_region
        %s224 = ssub.s32 %s16, 1
        %s225 = sand.u32 %s52, 1
        %s226 = scalar_lea.sflag [#allocation5], %s225
        %s227 = sand.u32 %s52, 1
        %s228 = smul.addr %s227, 8
        %s229 = scalar_lea.vmem [#allocation4], %s228
        // Predicated region
        $region29: #{loss_handler_forward.1} parent=27 // pred_check
          %p230 = pneg %p65
        $region30: #{loss_handler_forward.1} parent=27 // pred_check_branch
          %232 = sbr.rel (%p230) target = $region32
        $region31: #{loss_handler_forward.1} parent=27 // pred_region
          %233 = dma.done %s226, 128
        $region32: #{loss_handler_forward.1} parent=27 // pred_fallthru
          _
        %s234 = sand.u32 %s82, 1
        %s235 = scalar_lea.sflag [#allocation7], %s234
        %s236 = sand.u32 %s82, 1
        %s237 = smul.addr %s236, 8
        %s238 = scalar_lea.vmem [#allocation6], %s237
        // Predicated region
        $region33: #{loss_handler_forward.1} parent=27 // pred_check
          %p239 = pneg %p95
        $region34: #{loss_handler_forward.1} parent=27 // pred_check_branch
          %241 = sbr.rel (%p239) target = $region36
        $region35: #{loss_handler_forward.1} parent=27 // pred_region
          %242 = dma.done %s235, 128
        $region36: #{loss_handler_forward.1} parent=27 // pred_fallthru
          _
        %s243 = sand.u32 %s52, 1
        %s244 = scalar_lea.sflag [#allocation5], %s243
        %s245 = sand.u32 %s52, 1
        %s246 = smul.addr %s245, 8
        %s247 = scalar_lea.vmem [#allocation4], %s246
        %p248 = pneg %p65
        %p249 = pneg %p62
        %s250 = sand.u32 %s82, 1
        %s251 = scalar_lea.sflag [#allocation7], %s250
        %s252 = sand.u32 %s82, 1
        %s253 = smul.addr %s252, 8
        %s254 = scalar_lea.vmem [#allocation6], %s253
        %p255 = pneg %p95
        %p256 = pneg %p92
        %p257 = pneg %p123
        %p258 = pneg %p120
        %p259 = scmp.lt.s32.totalorder %s26, 0
        %s260 = scalar_select %p259, %s26, 0
        %p261 = scmp.lt.s32.totalorder %s27, 1
        %s262 = scalar_select %p261, %s27, 1
        %s263 = smul.addr %s260, 2
        %s264 = sadd.s32 %s262, %s263
        %s265 = smul.addr %s264, 8
        %s266 = scalar_lea.vmem %s2, %s265
        %p267 = pneg %p151
        %p268 = pneg %p148
        %p269 = scmp.lt.s32.totalorder %s26, 0
        %s270 = scalar_select %p269, %s26, 0
        %p271 = scmp.lt.s32.totalorder %s27, 1
        %s272 = scalar_select %p271, %s27, 1
        %s273 = smul.addr %s270, 2
        %s274 = sadd.s32 %s272, %s273
        %s275 = smul.addr %s274, 8
        %s276 = scalar_lea.vmem %s3, %s275
        %s277 = sadd.s32 %s26, %s28
        %s278 = smul.u32 2, %s277
        %s279 = sadd.s32 %s26, %s28
        %s280 = smul.u32 2, %s279
        %p281 = scmp.lt.s32.totalorder %s26, 0
        %s282 = scalar_select %p281, %s26, 0
        %p283 = scmp.lt.s32.totalorder %s27, 1
        %s284 = scalar_select %p283, %s27, 1
        %s285 = smul.addr %s282, 2
        %s286 = sadd.s32 %s284, %s285
        %s287 = smul.addr %s286, 8
        %s288 = scalar_lea.vmem %s2, %s287
        %p289 = scmp.lt.s32.totalorder %s26, 0
        %s290 = scalar_select %p289, %s26, 0
        %p291 = scmp.lt.s32.totalorder %s27, 1
        %s292 = scalar_select %p291, %s27, 1
        %s293 = smul.addr %s290, 2
        %s294 = sadd.s32 %s292, %s293
        %s295 = smul.addr %s294, 8
        %s296 = scalar_lea.vmem %s3, %s295
        %p297 = scmp.eq.s32.totalorder %s28, 0
        // Predicated region
        $region37: #{loss_handler_forward.1} parent=27 // pred_check
          %p298 = pneg %p297
        $region38: #{loss_handler_forward.1} parent=27 // pred_check_branch
          %300 = sbr.rel (%p298) target = $region40
        $region39: #{loss_handler_forward.1} parent=27 // pred_region
          %301 = vst [vmem:[#allocation2] sm:$0xff] 0.0
          %302 = vst [vmem:[#allocation3] sm:$0xff] 0
        $region40: #{loss_handler_forward.1} parent=27 // pred_fallthru
          _
        %v303 = vld [vmem:[%s229] sm:$0xf]
        %v304 = vld [vmem:[%s229 + $0x4] sm:$0xf]
        %v305 = vunpack.c.l.bf16 %v303
        %v306 = vunpack.c.l.bf16 %v304
        %v307 = vld [vmem:[%s238] sm:$0xf]
        %v308 = vld [vmem:[%s238 + $0x4] sm:$0xf]
        %v309 = vunpack.c.l.bf16 %v307
        %v310 = vunpack.c.l.bf16 %v308
        %v311 = vsub.f32 %v305, %v309
        %v312 = vsub.f32 %v306, %v310
        %v313 = vld [vmem:[#allocation2] sm:$0xff]
        %v314 = vmul.f32 %v311, %v311
        %v315 = vmul.f32 %v312, %v312
        %v316 = vadd.f32 %v314, %v315
        %v317 = vadd.f32 %v313, %v316
        %318 = vst [vmem:[#allocation2] sm:$0xff] %v317
        %v319 = vld [vmem:[#allocation3] sm:$0xff]
        %vm320 = vcmp.ne.f32.partialorder %v309, %v309
        %vm321 = vcmp.ne.f32.partialorder %v310, %v310
        %v322 = vsel %vm320, 1, 0
        %v323 = vsel %vm321, 1, 0
        %v324 = vadd.s32 %v322, %v323
        %v325 = vadd.s32 %v319, %v324
        %326 = vst [vmem:[#allocation3] sm:$0xff] %v325
        // Predicated region
        $region41: #{loss_handler_forward.1} parent=27 // pred_check
          %p327 = pneg %p297
        $region42: #{loss_handler_forward.1} parent=27 // pred_check_branch
          %329 = sbr.rel (%p327) target = $region44
        $region43: #{loss_handler_forward.1} parent=27 // pred_region
          %v330 = vld [vmem:[#allocation2] sm:$0xff]
          %331 = vst [vmem:[%s288] sm:$0xff] %v330
          %v332 = vld [vmem:[#allocation3] sm:$0xff]
          %333 = vst [vmem:[%s296] sm:$0xff] %v332
        $region44: #{loss_handler_forward.1} parent=27 // pred_fallthru
          _
        %p334 = scmp.lt.s32.totalorder %s26, 0
        %s335 = scalar_select %p334, %s26, 0
        %p336 = scmp.lt.s32.totalorder %s27, 1
        %s337 = scalar_select %p336, %s27, 1
        %s338 = smul.addr %s335, 2
        %s339 = sadd.s32 %s337, %s338
        %s340 = smul.addr %s339, 8
        %s341 = scalar_lea.vmem %s2, %s340
        %p342 = scmp.lt.s32.totalorder %s26, 0
        %s343 = scalar_select %p342, %s26, 0
        %p344 = scmp.lt.s32.totalorder %s27, 1
        %s345 = scalar_select %p344, %s27, 1
        %s346 = smul.addr %s343, 2
        %s347 = sadd.s32 %s345, %s346
        %s348 = smul.addr %s347, 8
        %s349 = scalar_lea.vmem %s3, %s348
        // Predicated region
        $region45: #{loss_handler_forward.1} parent=27 // pred_check
          %p350 = pneg %p120
        $region46: #{loss_handler_forward.1} parent=27 // pred_check_branch
          %352 = sbr.rel (%p350) target = $region48
        $region47: #{loss_handler_forward.1} parent=27 // pred_region
          _
        $region48: #{loss_handler_forward.1} parent=27 // pred_fallthru
          _
        // Predicated region
        $region49: #{loss_handler_forward.1} parent=27 // pred_check
          %p353 = pneg %p148
        $region50: #{loss_handler_forward.1} parent=27 // pred_check_branch
          %355 = sbr.rel (%p353) target = $region52
        $region51: #{loss_handler_forward.1} parent=27 // pred_region
          _
        $region52: #{loss_handler_forward.1} parent=27 // pred_fallthru
          _
      $region28: #{loss_handler_forward.1} parent=5 // pred_fallthru
        _
      %p356 = scmp.le.s32.totalorder 2, %s16
      // Predicated region
      $region53: #{loss_handler_forward.1} parent=5 // pred_check
        %p357 = pneg %p356
      $region54: #{loss_handler_forward.1} parent=5 // pred_check_branch
        %359 = sbr.rel (%p357) target = $region56
      $region55: #{loss_handler_forward.1} parent=5 // pred_region
        %s360 = ssub.s32 %s16, 2
        // Predicated region
        $region57: #{loss_handler_forward.1} parent=55 // pred_check
          %p361 = pneg %p126
        $region58: #{loss_handler_forward.1} parent=55 // pred_check_branch
          %363 = sbr.rel (%p361) target = $region60
        $region59: #{loss_handler_forward.1} parent=55 // pred_region
          %p364 = scmp.lt.s32.totalorder %s29, 0
          %s365 = scalar_select %p364, %s29, 0
          %p366 = scmp.lt.s32.totalorder %s30, 1
          %s367 = scalar_select %p366, %s30, 1
          %s368 = smul.addr %s365, 2
          %s369 = sadd.s32 %s367, %s368
          %s370 = smul.addr %s369, 8
          %s371 = scalar_lea.vmem %s2, %s370
        $region60: #{loss_handler_forward.1} parent=55 // pred_fallthru
          _
        // Predicated region
        $region61: #{loss_handler_forward.1} parent=55 // pred_check
          %p372 = pneg %p154
        $region62: #{loss_handler_forward.1} parent=55 // pred_check_branch
          %374 = sbr.rel (%p372) target = $region64
        $region63: #{loss_handler_forward.1} parent=55 // pred_region
          %p375 = scmp.lt.s32.totalorder %s29, 0
          %s376 = scalar_select %p375, %s29, 0
          %p377 = scmp.lt.s32.totalorder %s30, 1
          %s378 = scalar_select %p377, %s30, 1
          %s379 = smul.addr %s376, 2
          %s380 = sadd.s32 %s378, %s379
          %s381 = smul.addr %s380, 8
          %s382 = scalar_lea.vmem %s3, %s381
        $region64: #{loss_handler_forward.1} parent=55 // pred_fallthru
          _
      $region56: #{loss_handler_forward.1} parent=5 // pred_fallthru
        _
    $region6: #{loss_handler_forward.1} parent=1 // loop_footer
      %s20 = sadd.s32 1, %s16
    $region7: #{loss_handler_forward.1} parent=1 // loop_footer_branch
      %15 = sbr.rel target = $region3
    $region8: #{loss_handler_forward.1} parent=1 // loop_exit
      _
    %383 = vsyncpa [#allocation5], 1
    %s384 = scalar_lea.sflag [#allocation5], 1
    %385 = vsyncpa %s384, 1
    %386 = vsyncpa [#allocation7], 1
    %s387 = scalar_lea.sflag [#allocation7], 1
    %388 = vsyncpa %s387, 1

</llo_original>
